<compile_context>
chip_gen: v7x
topology: tpu7x:2x2x1
jax: 0.10.0
libtpu: 0.0.40
codegen_flags: <defaults>
</compile_context>

<pallas_src>
import functools

import jax
import jax.numpy as jnp
from jax import lax
from jax.experimental import pallas as pl
from jax.experimental.pallas import tpu as pltpu

EPS_BN = 1e-5    # nn.BatchNorm1d default eps
EPS_LN = 1e-5    # LayerNorm eps
OUT_W = 128      # lane-dense output width


def _rup8(n):
    return (n + 7) // 8 * 8


# --------------------------- packed-slab layout ------------------------------
def _layout(h, T, D, A):
    """Row offsets of every parameter block inside the single packed slab.

    Slab width = 2*h lanes; blocks narrower than that occupy the leading lanes
    (the kernel slices the ref accordingly).
    """
    L = {}
    r = 0

    def add(name, rows, align=True):
        nonlocal r
        if align:
            r = _rup8(r)
        L[name] = r
        r += rows

    add("w1T", T)           # conv1 weight, transposed: (T, 2h)
    add("w2T", 2 * h)       # conv2 weight, transposed: (2h, h)      [lanes 0:h]
    add("wsb", h)           # lane-packed branch weights, state part: (h, 2h)
    add("wab", A)           # lane-packed branch weights, action part: (A, 2h)
    add("b1", 1)            # conv1 bias (2h,)
    add("b2", 1, False)     # conv2 bias (h,)
    add("be", 1, False)     # state_enc bias (h,)
    add("bb", 1, False)     # lane-packed branch bias (2h,)
    add("lng", 1, False)    # lane-packed LayerNorm gamma (2h,)
    add("lnb", 1, False)    # lane-packed LayerNorm beta  (2h,)
    add("whb", 1, False)    # lane-packed head weights (2h,)
    add("bh", 1, False)     # head biases, lanes 0:2
    add("we", D * h)        # state_enc weight, (D*h, h), d-outer/c-inner [lanes 0:h]
    L["rows"] = _rup8(r)
    L["width"] = 2 * h
    return L


# ------------------------------- fused kernel --------------------------------
def _make_kernel(B, T, D, H, A, L):
    H2 = 2 * H

    def kernel(x_ref, a_ref, p_ref, o_ref, s2_ref, sw_ref):
        f32 = jnp.float32

        def row(name, width=H2):
            r = L[name]
            return p_ref[r:r + 1, 0:width]

        # ---- conv1 (T x 1) + conv2 (1 x 1): two bulk MXU matmuls over the
        #      (spatial d, batch b)-major rows.
        s1 = jnp.tanh(jnp.dot(x_ref[...], p_ref[L["w1T"]:L["w1T"] + T, :],
                              preferred_element_type=f32) + row("b1"))
        s2_ref[...] = jnp.tanh(
            jnp.dot(s1, p_ref[L["w2T"]:L["w2T"] + H2, 0:H],
                    preferred_element_type=f32) + row("b2", H))

        # ---- regroup (D*B, H) -> (B, D*H): D small static ref->ref copies
        #      (independent, pipelined; avoids unsupported value reshapes),
        #      then the whole state_enc contraction is ONE K=D*H matmul.
        for d in range(D):
            sw_ref[:, d * H:(d + 1) * H] = s2_ref[d * B:(d + 1) * B, :]
        e = jnp.dot(sw_ref[...], p_ref[L["we"]:L["we"] + D * H, 0:H],
                    preferred_element_type=f32)
        s_enc = jnp.tanh(e + row("be", H))                       # (B, H)

        # ---- BatchNorm1d (training-mode batch statistics), computed ONCE and
        #      shared by both branches.  concat([s_enc, action]) is realised as
        #      a split (exact, BN is per-feature); the per-branch BN affine is
        #      pre-folded into the lane-packed branch weights / biases.
        def bn(x):
            mu = jnp.mean(x, axis=0, keepdims=True)
            var = jnp.mean((x - mu) ** 2, axis=0, keepdims=True)
            return (x - mu) * lax.rsqrt(var + EPS_BN)

        ns = bn(s_enc)                                           # (B, H)
        na = bn(a_ref[...])                                      # (B, A)

        # ---- BOTH Q heads lane-packed in one (B, 2H) tile:
        #      lanes [0:H] = branch 1, lanes [H:2H] = branch 2.
        pre = (jnp.dot(ns, p_ref[L["wsb"]:L["wsb"] + H, :],
                       preferred_element_type=f32)
               + jnp.dot(na, p_ref[L["wab"]:L["wab"] + A, :],
                         preferred_element_type=f32)
               + row("bb"))                                      # (B, 2H)

        # per-half LayerNorm via masked lane reductions (no value slicing).
        col = lax.broadcasted_iota(jnp.int32, (B, H2), 1)
        left = col < H
        inv_h = 1.0 / H
        mu1 = jnp.sum(jnp.where(left, pre, 0.0), axis=-1, keepdims=True) * inv_h
        mu2 = jnp.sum(jnp.where(left, 0.0, pre), axis=-1, keepdims=True) * inv_h
        cen = pre - jnp.where(left, mu1, mu2)
        sq = cen * cen
        v1 = jnp.sum(jnp.where(left, sq, 0.0), axis=-1, keepdims=True) * inv_h
        v2 = jnp.sum(jnp.where(left, 0.0, sq), axis=-1, keepdims=True) * inv_h
        rstd = jnp.where(left, lax.rsqrt(v1 + EPS_LN), lax.rsqrt(v2 + EPS_LN))
        t = jnp.tanh(cen * rstd * row("lng") + row("lnb"))       # (B, 2H)

        # Linear(h -> 1) heads: VPU multiply + two masked lane reductions.
        tw = t * row("whb")
        q1 = (jnp.sum(jnp.where(left, tw, 0.0), axis=-1, keepdims=True)
              + p_ref[L["bh"]:L["bh"] + 1, 0:1])
        q2 = (jnp.sum(jnp.where(left, 0.0, tw), axis=-1, keepdims=True)
              + p_ref[L["bh"]:L["bh"] + 1, 1:2])

        # ---- lane-dense (B, 128) output; the wrapper slices columns 0 and 1.
        ocol = lax.broadcasted_iota(jnp.int32, (B, OUT_W), 1)
        o_ref[...] = jnp.where(ocol == 0, q1, jnp.where(ocol == 1, q2, 0.0))

    return kernel


# ------------------------------- parameters ----------------------------------
def init_params(key, h, T, D, A):
    ks = jax.random.split(key, 24)
    rn = lambda k, shp, s=0.1: jax.random.normal(k, shp, jnp.float32) * s
    ru = lambda k, shp: jax.random.uniform(k, shp, jnp.float32, 0.5, 1.5)
    p = {}
    p["conv1_w"] = rn(ks[0], (2 * h, 1, T, 1))
    p["conv1_b"] = rn(ks[1], (2 * h,))
    p["conv2_w"] = rn(ks[2], (h, 2 * h, 1, 1))
    p["conv2_b"] = rn(ks[3], (h,))
    p["enc_w"] = rn(ks[4], (h, h * D))
    p["enc_b"] = rn(ks[5], (h,))
    p["bn1_g"] = ru(ks[6], (h + A,))
    p["bn1_b"] = rn(ks[7], (h + A,))
    p["bn2_g"] = ru(ks[8], (h + A,))
    p["bn2_b"] = rn(ks[9], (h + A,))
    p["lin11_w"] = rn(ks[10], (h, h + A)) * 0.1       # .mul_(0.1) in __init__
    p["lin11_b"] = rn(ks[11], (h,)) * 0.1
    p["lin1_w"] = rn(ks[12], (1, h)) * 0.1
    p["lin1_b"] = rn(ks[13], (1,)) * 0.1
    p["ln1_g"] = ru(ks[14], (h,))
    p["ln1_b"] = rn(ks[15], (h,))
    p["lin22_w"] = rn(ks[16], (h, h + A)) * 0.1
    p["lin22_b"] = rn(ks[17], (h,))                   # bias of linear22 is NOT scaled
    p["lin2_w"] = rn(ks[18], (1, h)) * 0.1
    p["lin2_b"] = rn(ks[19], (1,)) * 0.1
    p["ln2_g"] = ru(ks[20], (h,))
    p["ln2_b"] = rn(ks[21], (h,))
    return p


def prepare_params(p, h, T, D, A):
    """One-time repack of the PyTorch-layout parameters into a single
    VMEM-friendly slab (hoisted out of the per-call forward path)."""
    f32 = jnp.float32
    H2 = 2 * h
    L = _layout(h, T, D, A)

    # BatchNorm affine folded into the following Linear (exact); the two
    # branches are lane-packed side by side: lanes [0:h] = Q1, [h:2h] = Q2.
    def fold_w(g, w):                       # w: (h, h+A) -> scaled (h+A, h)
        return g[:, None] * w.T

    w1e = fold_w(p["bn1_g"], p["lin11_w"])
    w2e = fold_w(p["bn2_g"], p["lin22_w"])
    b1e = p["bn1_b"] @ p["lin11_w"].T + p["lin11_b"]
    b2e = p["bn2_b"] @ p["lin22_w"].T + p["lin22_b"]

    # state_enc weight permuted so the (spatial, batch)-major conv rows, after
    # the in-kernel (D*B, h) -> (B, D*h) regroup (d-outer, c-inner), match
    # PyTorch's NCHW flatten index (c*D + d).
    we_perm = jnp.transpose(p["enc_w"].reshape(h, h, D), (2, 1, 0)).reshape(D * h, h)

    blocks = {
        "w1T": p["conv1_w"].reshape(H2, T).T,
        "w2T": p["conv2_w"].reshape(h, H2).T,
        "wsb": jnp.concatenate([w1e[:h], w2e[:h]], axis=1),     # (h, 2h)
        "wab": jnp.concatenate([w1e[h:], w2e[h:]], axis=1),     # (A, 2h)
        "b1": p["conv1_b"],
        "b2": p["conv2_b"],
        "be": p["enc_b"],
        "bb": jnp.concatenate([b1e, b2e]),
        "lng": jnp.concatenate([p["ln1_g"], p["ln2_g"]]),
        "lnb": jnp.concatenate([p["ln1_b"], p["ln2_b"]]),
        "whb": jnp.concatenate([p["lin1_w"][0], p["lin2_w"][0]]),
        "bh": jnp.stack([p["lin1_b"][0], p["lin2_b"][0]]),
        "we": we_perm,
    }
    slab = jnp.zeros((L["rows"], H2), f32)
    for name, val in blocks.items():
        val = jnp.asarray(val, f32)
        if val.ndim == 1:
            val = val[None, :]
        slab = slab.at[L[name]:L[name] + val.shape[0], 0:val.shape[1]].set(val)
    return slab


# --------------------------------- forward -----------------------------------
def conv_critic_forward(slab, state, action, h, T, D, A):
    B = state.shape[0]
    f32 = jnp.float32
    # Per-call layout work only: (B, T, D) -> (D*B, T), rows (spatial d,
    # batch b)-major; all parameter packing was done once in prepare_params.
    x2 = jnp.transpose(state.astype(f32), (2, 0, 1)).reshape(D * B, T)

    L = _layout(h, T, D, A)
    kernel = _make_kernel(B, T, D, h, A, L)
    # Single fused, grid-less call: total VMEM footprint is a few hundred KB,
    # well under the scoped limit on v5e/v6e/v7x.
    # TODO(synk): for large replay-buffer batches, grid over B-tiles with
    #   dimension_semantics=("parallel",) and a two-pass BatchNorm so v7x's
    #   second TensorCore is used; at B=2 a grid would only add overhead.
    q = pl.pallas_call(
        kernel,
        out_shape=jax.ShapeDtypeStruct((B, OUT_W), f32),
        in_specs=[pl.BlockSpec(memory_space=pltpu.MemorySpace.VMEM)] * 3,
        out_specs=pl.BlockSpec(memory_space=pltpu.MemorySpace.VMEM),
        scratch_shapes=[pltpu.VMEM((D * B, h), f32),     # conv2 output
                        pltpu.VMEM((B, D * h), f32)],    # regrouped (B, D*h)
    )(x2, action.astype(f32), slab)
    return q[:, 0:1], q[:, 1:2]


# ---------------------------- pure-JAX reference -----------------------------
def reference_forward(params, state, action, h, T, D, A):
    B = state.shape[0]
    w1 = params["conv1_w"].reshape(2 * h, T)
    s1 = jnp.tanh(jnp.einsum("ct,btd->bcd", w1, state) + params["conv1_b"][None, :, None])
    w2 = params["conv2_w"].reshape(h, 2 * h)
    s2 = jnp.tanh(jnp.einsum("kc,bcd->bkd", w2, s1) + params["conv2_b"][None, :, None])
    s_flat = s2.reshape(B, h * D)                              # NCHW flatten: c*D + d
    s_enc = jnp.tanh(s_flat @ params["enc_w"].T + params["enc_b"])
    out = jnp.concatenate([s_enc, action], axis=1)

    def bn(x, g, b):
        mu = x.mean(0, keepdims=True)
        var = ((x - mu) ** 2).mean(0, keepdims=True)
        return (x - mu) / jnp.sqrt(var + EPS_BN) * g + b

    def branch(g, bb, w, b, lg, lb, wh, bh):
        x = bn(out, g[None], bb[None])
        hlin = x @ w.T + b
        m = hlin.mean(-1, keepdims=True)
        v = ((hlin - m) ** 2).mean(-1, keepdims=True)
        hn = (hlin - m) / jnp.sqrt(v + EPS_LN) * lg + lb
        return jnp.tanh(hn) @ wh.T + bh

    o1 = branch(params["bn1_g"], params["bn1_b"], params["lin11_w"], params["lin11_b"],
                params["ln1_g"], params["ln1_b"], params["lin1_w"], params["lin1_b"])
    o2 = branch(params["bn2_g"], params["bn2_b"], params["lin22_w"], params["lin22_b"],
                params["ln2_g"], params["ln2_b"], params["lin2_w"], params["lin2_b"])
    return o1, o2


if __name__ == "__main__":
    # small shapes consistent with the module
    B, T, D, H, A = 2, 8, 16, 32, 4   # batch, state_length, state_dim, hidden, action_dim

    key = jax.random.PRNGKey(0)
    kp, ks, ka = jax.random.split(key, 3)
    params = init_params(kp, H, T, D, A)
    state = jax.random.normal(ks, (B, T, D), jnp.float32)
    action = jax.random.normal(ka, (B, A), jnp.float32)

    slab = prepare_params(params, H, T, D, A)          # one-time parameter packing
    fwd = jax.jit(functools.partial(conv_critic_forward, h=H, T=T, D=D, A=A))

    out1, out2 = fwd(slab, state, action)
    out1, out2 = jax.block_until_ready(out1), jax.block_until_ready(out2)

    r1, r2 = reference_forward(params, state, action, H, T, D, A)
    assert out1.shape == (B, 1) and out2.shape == (B, 1)
    assert jnp.allclose(out1, r1, atol=2e-4), (out1, r1)
    assert jnp.allclose(out2, r2, atol=2e-4), (out2, r2)

    print("KERNEL_OK")
</pallas_src>

<mosaic_0001>
module attributes {stable_mosaic.version = 11 : i64} {
  func.func @kernel(%arg0: memref<32x8xf32, #tpu.memory_space<vmem>>, %arg1: memref<2x4xf32, #tpu.memory_space<vmem>>, %arg2: memref<632x64xf32, #tpu.memory_space<vmem>>, %arg3: memref<2x128xf32, #tpu.memory_space<vmem>>, %arg4: memref<32x32xf32, #tpu.memory_space<vmem>>, %arg5: memref<2x512xf32, #tpu.memory_space<vmem>>) attributes {dimension_semantics = [], scalar_prefetch = 0 : i64, scratch_operands = 2 : i64, tpu.core_type = #tpu.core_type<tc>} {
    %c0 = arith.constant 0 : index
    %c0_0 = arith.constant 0 : index
    %0 = vector.load %arg0[%c0, %c0_0] : memref<32x8xf32, #tpu.memory_space<vmem>>, vector<32x8xf32>
    %c0_1 = arith.constant 0 : index
    %c0_2 = arith.constant 0 : index
    %1 = vector.load %arg2[%c0_1, %c0_2] : memref<632x64xf32, #tpu.memory_space<vmem>>, vector<8x64xf32>
    %cst = arith.constant dense<0.000000e+00> : vector<32x64xf32>
    %2 = tpu.matmul %0, %1, %cst {dimension_numbers = #tpu.dot_dimension_numbers<[1], [0], [0], [1], [0, 0, 1, 1], [], []>} : vector<32x8xf32>, vector<8x64xf32>, vector<32x64xf32> -> vector<32x64xf32>
    %c112 = arith.constant 112 : index
    %c0_3 = arith.constant 0 : index
    %3 = vector.load %arg2[%c112, %c0_3] : memref<632x64xf32, #tpu.memory_space<vmem>>, vector<1x64xf32>
    %4 = vector.broadcast %3 : vector<1x64xf32> to vector<32x64xf32>
    %5 = arith.addf %2, %4 : vector<32x64xf32>
    %6 = math.tanh %5 : vector<32x64xf32>
    %c8 = arith.constant 8 : index
    %c0_4 = arith.constant 0 : index
    %7 = vector.load %arg2[%c8, %c0_4] : memref<632x64xf32, #tpu.memory_space<vmem>>, vector<64x32xf32>
    %cst_5 = arith.constant dense<0.000000e+00> : vector<32x32xf32>
    %8 = tpu.matmul %6, %7, %cst_5 {dimension_numbers = #tpu.dot_dimension_numbers<[1], [0], [0], [1], [0, 0, 1, 1], [], []>} : vector<32x64xf32>, vector<64x32xf32>, vector<32x32xf32> -> vector<32x32xf32>
    %c113 = arith.constant 113 : index
    %c0_6 = arith.constant 0 : index
    %9 = vector.load %arg2[%c113, %c0_6] : memref<632x64xf32, #tpu.memory_space<vmem>>, vector<1x32xf32>
    %10 = vector.broadcast %9 : vector<1x32xf32> to vector<32x32xf32>
    %11 = arith.addf %8, %10 : vector<32x32xf32>
    %12 = math.tanh %11 : vector<32x32xf32>
    %c0_7 = arith.constant 0 : index
    %c0_8 = arith.constant 0 : index
    %13 = vector.load %arg4[%c0_7, %c0_8] : memref<32x32xf32, #tpu.memory_space<vmem>>, vector<32x32xf32>
    tpu.vector_store %arg4[%c0_7, %c0_8], %12 {strides = array<i32>} : memref<32x32xf32, #tpu.memory_space<vmem>>, vector<32x32xf32>,
    %c0_9 = arith.constant 0 : index
    %c0_10 = arith.constant 0 : index
    %14 = vector.load %arg4[%c0_9, %c0_10] : memref<32x32xf32, #tpu.memory_space<vmem>>, vector<2x32xf32>
    %c0_11 = arith.constant 0 : index
    %c0_12 = arith.constant 0 : index
    %15 = vector.load %arg5[%c0_11, %c0_12] : memref<2x512xf32, #tpu.memory_space<vmem>>, vector<2x32xf32>
    tpu.vector_store %arg5[%c0_11, %c0_12], %14 {strides = array<i32>} : memref<2x512xf32, #tpu.memory_space<vmem>>, vector<2x32xf32>,
    %c2 = arith.constant 2 : index
    %c0_13 = arith.constant 0 : index
    %16 = vector.load %arg4[%c2, %c0_13] : memref<32x32xf32, #tpu.memory_space<vmem>>, vector<2x32xf32>
    %c0_14 = arith.constant 0 : index
    %c32 = arith.constant 32 : index
    %17 = vector.load %arg5[%c0_14, %c32] : memref<2x512xf32, #tpu.memory_space<vmem>>, vector<2x32xf32>
    tpu.vector_store %arg5[%c0_14, %c32], %16 {strides = array<i32>} : memref<2x512xf32, #tpu.memory_space<vmem>>, vector<2x32xf32>,
    %c4 = arith.constant 4 : index
    %c0_15 = arith.constant 0 : index
    %18 = vector.load %arg4[%c4, %c0_15] : memref<32x32xf32, #tpu.memory_space<vmem>>, vector<2x32xf32>
    %c0_16 = arith.constant 0 : index
    %c64 = arith.constant 64 : index
    %19 = vector.load %arg5[%c0_16, %c64] : memref<2x512xf32, #tpu.memory_space<vmem>>, vector<2x32xf32>
    tpu.vector_store %arg5[%c0_16, %c64], %18 {strides = array<i32>} : memref<2x512xf32, #tpu.memory_space<vmem>>, vector<2x32xf32>,
    %c6 = arith.constant 6 : index
    %c0_17 = arith.constant 0 : index
    %20 = vector.load %arg4[%c6, %c0_17] : memref<32x32xf32, #tpu.memory_space<vmem>>, vector<2x32xf32>
    %c0_18 = arith.constant 0 : index
    %c96 = arith.constant 96 : index
    %21 = vector.load %arg5[%c0_18, %c96] : memref<2x512xf32, #tpu.memory_space<vmem>>, vector<2x32xf32>
    tpu.vector_store %arg5[%c0_18, %c96], %20 {strides = array<i32>} : memref<2x512xf32, #tpu.memory_space<vmem>>, vector<2x32xf32>,
    %c8_19 = arith.constant 8 : index
    %c0_20 = arith.constant 0 : index
    %22 = vector.load %arg4[%c8_19, %c0_20] : memref<32x32xf32, #tpu.memory_space<vmem>>, vector<2x32xf32>
    %c0_21 = arith.constant 0 : index
    %c128 = arith.constant 128 : index
    %23 = vector.load %arg5[%c0_21, %c128] : memref<2x512xf32, #tpu.memory_space<vmem>>, vector<2x32xf32>
    tpu.vector_store %arg5[%c0_21, %c128], %22 {strides = array<i32>} : memref<2x512xf32, #tpu.memory_space<vmem>>, vector<2x32xf32>,
    %c10 = arith.constant 10 : index
    %c0_22 = arith.constant 0 : index
    %24 = vector.load %arg4[%c10, %c0_22] : memref<32x32xf32, #tpu.memory_space<vmem>>, vector<2x32xf32>
    %c0_23 = arith.constant 0 : index
    %c160 = arith.constant 160 : index
    %25 = vector.load %arg5[%c0_23, %c160] : memref<2x512xf32, #tpu.memory_space<vmem>>, vector<2x32xf32>
    tpu.vector_store %arg5[%c0_23, %c160], %24 {strides = array<i32>} : memref<2x512xf32, #tpu.memory_space<vmem>>, vector<2x32xf32>,
    %c12 = arith.constant 12 : index
    %c0_24 = arith.constant 0 : index
    %26 = vector.load %arg4[%c12, %c0_24] : memref<32x32xf32, #tpu.memory_space<vmem>>, vector<2x32xf32>
    %c0_25 = arith.constant 0 : index
    %c192 = arith.constant 192 : index
    %27 = vector.load %arg5[%c0_25, %c192] : memref<2x512xf32, #tpu.memory_space<vmem>>, vector<2x32xf32>
    tpu.vector_store %arg5[%c0_25, %c192], %26 {strides = array<i32>} : memref<2x512xf32, #tpu.memory_space<vmem>>, vector<2x32xf32>,
    %c14 = arith.constant 14 : index
    %c0_26 = arith.constant 0 : index
    %28 = vector.load %arg4[%c14, %c0_26] : memref<32x32xf32, #tpu.memory_space<vmem>>, vector<2x32xf32>
    %c0_27 = arith.constant 0 : index
    %c224 = arith.constant 224 : index
    %29 = vector.load %arg5[%c0_27, %c224] : memref<2x512xf32, #tpu.memory_space<vmem>>, vector<2x32xf32>
    tpu.vector_store %arg5[%c0_27, %c224], %28 {strides = array<i32>} : memref<2x512xf32, #tpu.memory_space<vmem>>, vector<2x32xf32>,
    %c16 = arith.constant 16 : index
    %c0_28 = arith.constant 0 : index
    %30 = vector.load %arg4[%c16, %c0_28] : memref<32x32xf32, #tpu.memory_space<vmem>>, vector<2x32xf32>
    %c0_29 = arith.constant 0 : index
    %c256 = arith.constant 256 : index
    %31 = vector.load %arg5[%c0_29, %c256] : memref<2x512xf32, #tpu.memory_space<vmem>>, vector<2x32xf32>
    tpu.vector_store %arg5[%c0_29, %c256], %30 {strides = array<i32>} : memref<2x512xf32, #tpu.memory_space<vmem>>, vector<2x32xf32>,
    %c18 = arith.constant 18 : index
    %c0_30 = arith.constant 0 : index
    %32 = vector.load %arg4[%c18, %c0_30] : memref<32x32xf32, #tpu.memory_space<vmem>>, vector<2x32xf32>
    %c0_31 = arith.constant 0 : index
    %c288 = arith.constant 288 : index
    %33 = vector.load %arg5[%c0_31, %c288] : memref<2x512xf32, #tpu.memory_space<vmem>>, vector<2x32xf32>
    tpu.vector_store %arg5[%c0_31, %c288], %32 {strides = array<i32>} : memref<2x512xf32, #tpu.memory_space<vmem>>, vector<2x32xf32>,
    %c20 = arith.constant 20 : index
    %c0_32 = arith.constant 0 : index
    %34 = vector.load %arg4[%c20, %c0_32] : memref<32x32xf32, #tpu.memory_space<vmem>>, vector<2x32xf32>
    %c0_33 = arith.constant 0 : index
    %c320 = arith.constant 320 : index
    %35 = vector.load %arg5[%c0_33, %c320] : memref<2x512xf32, #tpu.memory_space<vmem>>, vector<2x32xf32>
    tpu.vector_store %arg5[%c0_33, %c320], %34 {strides = array<i32>} : memref<2x512xf32, #tpu.memory_space<vmem>>, vector<2x32xf32>,
    %c22 = arith.constant 22 : index
    %c0_34 = arith.constant 0 : index
    %36 = vector.load %arg4[%c22, %c0_34] : memref<32x32xf32, #tpu.memory_space<vmem>>, vector<2x32xf32>
    %c0_35 = arith.constant 0 : index
    %c352 = arith.constant 352 : index
    %37 = vector.load %arg5[%c0_35, %c352] : memref<2x512xf32, #tpu.memory_space<vmem>>, vector<2x32xf32>
    tpu.vector_store %arg5[%c0_35, %c352], %36 {strides = array<i32>} : memref<2x512xf32, #tpu.memory_space<vmem>>, vector<2x32xf32>,
    %c24 = arith.constant 24 : index
    %c0_36 = arith.constant 0 : index
    %38 = vector.load %arg4[%c24, %c0_36] : memref<32x32xf32, #tpu.memory_space<vmem>>, vector<2x32xf32>
    %c0_37 = arith.constant 0 : index
    %c384 = arith.constant 384 : index
    %39 = vector.load %arg5[%c0_37, %c384] : memref<2x512xf32, #tpu.memory_space<vmem>>, vector<2x32xf32>
    tpu.vector_store %arg5[%c0_37, %c384], %38 {strides = array<i32>} : memref<2x512xf32, #tpu.memory_space<vmem>>, vector<2x32xf32>,
    %c26 = arith.constant 26 : index
    %c0_38 = arith.constant 0 : index
    %40 = vector.load %arg4[%c26, %c0_38] : memref<32x32xf32, #tpu.memory_space<vmem>>, vector<2x32xf32>
    %c0_39 = arith.constant 0 : index
    %c416 = arith.constant 416 : index
    %41 = vector.load %arg5[%c0_39, %c416] : memref<2x512xf32, #tpu.memory_space<vmem>>, vector<2x32xf32>
    tpu.vector_store %arg5[%c0_39, %c416], %40 {strides = array<i32>} : memref<2x512xf32, #tpu.memory_space<vmem>>, vector<2x32xf32>,
    %c28 = arith.constant 28 : index
    %c0_40 = arith.constant 0 : index
    %42 = vector.load %arg4[%c28, %c0_40] : memref<32x32xf32, #tpu.memory_space<vmem>>, vector<2x32xf32>
    %c0_41 = arith.constant 0 : index
    %c448 = arith.constant 448 : index
    %43 = vector.load %arg5[%c0_41, %c448] : memref<2x512xf32, #tpu.memory_space<vmem>>, vector<2x32xf32>
    tpu.vector_store %arg5[%c0_41, %c448], %42 {strides = array<i32>} : memref<2x512xf32, #tpu.memory_space<vmem>>, vector<2x32xf32>,
    %c30 = arith.constant 30 : index
    %c0_42 = arith.constant 0 : index
    %44 = vector.load %arg4[%c30, %c0_42] : memref<32x32xf32, #tpu.memory_space<vmem>>, vector<2x32xf32>
    %c0_43 = arith.constant 0 : index
    %c480 = arith.constant 480 : index
    %45 = vector.load %arg5[%c0_43, %c480] : memref<2x512xf32, #tpu.memory_space<vmem>>, vector<2x32xf32>
    tpu.vector_store %arg5[%c0_43, %c480], %44 {strides = array<i32>} : memref<2x512xf32, #tpu.memory_space<vmem>>, vector<2x32xf32>,
    %c0_44 = arith.constant 0 : index
    %c0_45 = arith.constant 0 : index
    %46 = vector.load %arg5[%c0_44, %c0_45] : memref<2x512xf32, #tpu.memory_space<vmem>>, vector<2x512xf32>
    %c120 = arith.constant 120 : index
    %c0_46 = arith.constant 0 : index
    %47 = vector.load %arg2[%c120, %c0_46] : memref<632x64xf32, #tpu.memory_space<vmem>>, vector<512x32xf32>
    %cst_47 = arith.constant dense<0.000000e+00> : vector<2x32xf32>
    %48 = tpu.matmul %46, %47, %cst_47 {dimension_numbers = #tpu.dot_dimension_numbers<[1], [0], [0], [1], [0, 0, 1, 1], [], []>} : vector<2x512xf32>, vector<512x32xf32>, vector<2x32xf32> -> vector<2x32xf32>
    %c114 = arith.constant 114 : index
    %c0_48 = arith.constant 0 : index
    %49 = vector.load %arg2[%c114, %c0_48] : memref<632x64xf32, #tpu.memory_space<vmem>>, vector<1x32xf32>
    %50 = vector.broadcast %49 : vector<1x32xf32> to vector<2x32xf32>
    %51 = arith.addf %48, %50 : vector<2x32xf32>
    %52 = math.tanh %51 : vector<2x32xf32>
    %cst_49 = arith.constant dense<0.000000e+00> : vector<32xf32>
    %53 = vector.multi_reduction <add>, %52, %cst_49 [0] : vector<2x32xf32> to vector<32xf32>
    %54 = vector.shape_cast %53 : vector<32xf32> to vector<1x32xf32>
    %cst_50 = arith.constant 2.000000e+00 : f32
    %55 = vector.broadcast %cst_50 : f32 to vector<1x32xf32>
    %56 = arith.divf %54, %55 : vector<1x32xf32>
    %57 = vector.broadcast %56 : vector<1x32xf32> to vector<2x32xf32>
    %58 = arith.subf %52, %57 : vector<2x32xf32>
    %59 = arith.mulf %58, %58 : vector<2x32xf32>
    %cst_51 = arith.constant dense<0.000000e+00> : vector<32xf32>
    %60 = vector.multi_reduction <add>, %59, %cst_51 [0] : vector<2x32xf32> to vector<32xf32>
    %61 = vector.shape_cast %60 : vector<32xf32> to vector<1x32xf32>
    %cst_52 = arith.constant 2.000000e+00 : f32
    %62 = vector.broadcast %cst_52 : f32 to vector<1x32xf32>
    %63 = arith.divf %61, %62 : vector<1x32xf32>
    %64 = vector.broadcast %56 : vector<1x32xf32> to vector<2x32xf32>
    %65 = arith.subf %52, %64 : vector<2x32xf32>
    %cst_53 = arith.constant 9.99999974E-6 : f32
    %66 = vector.broadcast %cst_53 : f32 to vector<1x32xf32>
    %67 = arith.addf %63, %66 : vector<1x32xf32>
    %68 = math.rsqrt %67 : vector<1x32xf32>
    %69 = vector.broadcast %68 : vector<1x32xf32> to vector<2x32xf32>
    %70 = arith.mulf %65, %69 : vector<2x32xf32>
    %c0_54 = arith.constant 0 : index
    %c0_55 = arith.constant 0 : index
    %71 = vector.load %arg1[%c0_54, %c0_55] : memref<2x4xf32, #tpu.memory_space<vmem>>, vector<2x4xf32>
    %cst_56 = arith.constant dense<0.000000e+00> : vector<4xf32>
    %72 = vector.multi_reduction <add>, %71, %cst_56 [0] : vector<2x4xf32> to vector<4xf32>
    %73 = vector.shape_cast %72 : vector<4xf32> to vector<1x4xf32>
    %cst_57 = arith.constant 2.000000e+00 : f32
    %74 = vector.broadcast %cst_57 : f32 to vector<1x4xf32>
    %75 = arith.divf %73, %74 : vector<1x4xf32>
    %76 = vector.broadcast %75 : vector<1x4xf32> to vector<2x4xf32>
    %77 = arith.subf %71, %76 : vector<2x4xf32>
    %78 = arith.mulf %77, %77 : vector<2x4xf32>
    %cst_58 = arith.constant dense<0.000000e+00> : vector<4xf32>
    %79 = vector.multi_reduction <add>, %78, %cst_58 [0] : vector<2x4xf32> to vector<4xf32>
    %80 = vector.shape_cast %79 : vector<4xf32> to vector<1x4xf32>
    %cst_59 = arith.constant 2.000000e+00 : f32
    %81 = vector.broadcast %cst_59 : f32 to vector<1x4xf32>
    %82 = arith.divf %80, %81 : vector<1x4xf32>
    %83 = vector.broadcast %75 : vector<1x4xf32> to vector<2x4xf32>
    %84 = arith.subf %71, %83 : vector<2x4xf32>
    %cst_60 = arith.constant 9.99999974E-6 : f32
    %85 = vector.broadcast %cst_60 : f32 to vector<1x4xf32>
    %86 = arith.addf %82, %85 : vector<1x4xf32>
    %87 = math.rsqrt %86 : vector<1x4xf32>
    %88 = vector.broadcast %87 : vector<1x4xf32> to vector<2x4xf32>
    %89 = arith.mulf %84, %88 : vector<2x4xf32>
    %c72 = arith.constant 72 : index
    %c0_61 = arith.constant 0 : index
    %90 = vector.load %arg2[%c72, %c0_61] : memref<632x64xf32, #tpu.memory_space<vmem>>, vector<32x64xf32>
    %cst_62 = arith.constant dense<0.000000e+00> : vector<2x64xf32>
    %91 = tpu.matmul %70, %90, %cst_62 {dimension_numbers = #tpu.dot_dimension_numbers<[1], [0], [0], [1], [0, 0, 1, 1], [], []>} : vector<2x32xf32>, vector<32x64xf32>, vector<2x64xf32> -> vector<2x64xf32>
    %c104 = arith.constant 104 : index
    %c0_63 = arith.constant 0 : index
    %92 = vector.load %arg2[%c104, %c0_63] : memref<632x64xf32, #tpu.memory_space<vmem>>, vector<4x64xf32>
    %cst_64 = arith.constant dense<0.000000e+00> : vector<2x64xf32>
    %93 = tpu.matmul %89, %92, %cst_64 {dimension_numbers = #tpu.dot_dimension_numbers<[1], [0], [0], [1], [0, 0, 1, 1], [], []>} : vector<2x4xf32>, vector<4x64xf32>, vector<2x64xf32> -> vector<2x64xf32>
    %94 = arith.addf %91, %93 : vector<2x64xf32>
    %c115 = arith.constant 115 : index
    %c0_65 = arith.constant 0 : index
    %95 = vector.load %arg2[%c115, %c0_65] : memref<632x64xf32, #tpu.memory_space<vmem>>, vector<1x64xf32>
    %96 = vector.broadcast %95 : vector<1x64xf32> to vector<2x64xf32>
    %97 = arith.addf %94, %96 : vector<2x64xf32>
    %98 = tpu.iota {dimensions = array<i32: 1>} : vector<2x64xi32>
    %c32_i32 = arith.constant 32 : i32
    %99 = vector.broadcast %c32_i32 : i32 to vector<2x64xi32>
    %100 = arith.cmpi slt, %98, %99 : vector<2x64xi32>
    %cst_66 = arith.constant 0.000000e+00 : f32
    %101 = vector.broadcast %cst_66 : f32 to vector<2x64xf32>
    %102 = arith.select %100, %97, %101 : vector<2x64xi1>, vector<2x64xf32>
    %cst_67 = arith.constant dense<0.000000e+00> : vector<2xf32>
    %103 = vector.multi_reduction <add>, %102, %cst_67 [1] : vector<2x64xf32> to vector<2xf32>
    %104 = vector.shape_cast %103 : vector<2xf32> to vector<2x1xf32>
    %cst_68 = arith.constant 3.125000e-02 : f32
    %105 = vector.broadcast %cst_68 : f32 to vector<2x1xf32>
    %106 = arith.mulf %104, %105 : vector<2x1xf32>
    %cst_69 = arith.constant 0.000000e+00 : f32
    %107 = vector.broadcast %cst_69 : f32 to vector<2x64xf32>
    %108 = arith.select %100, %107, %97 : vector<2x64xi1>, vector<2x64xf32>
    %cst_70 = arith.constant dense<0.000000e+00> : vector<2xf32>
    %109 = vector.multi_reduction <add>, %108, %cst_70 [1] : vector<2x64xf32> to vector<2xf32>
    %110 = vector.shape_cast %109 : vector<2xf32> to vector<2x1xf32>
    %cst_71 = arith.constant 3.125000e-02 : f32
    %111 = vector.broadcast %cst_71 : f32 to vector<2x1xf32>
    %112 = arith.mulf %110, %111 : vector<2x1xf32>
    %113 = vector.shape_cast %106 : vector<2x1xf32> to vector<2x1xf32>
    %114 = vector.broadcast %113 : vector<2x1xf32> to vector<2x64xf32>
    %115 = vector.shape_cast %112 : vector<2x1xf32> to vector<2x1xf32>
    %116 = vector.broadcast %115 : vector<2x1xf32> to vector<2x64xf32>
    %117 = arith.select %100, %114, %116 : vector<2x64xi1>, vector<2x64xf32>
    %118 = arith.subf %97, %117 : vector<2x64xf32>
    %119 = arith.mulf %118, %118 : vector<2x64xf32>
    %cst_72 = arith.constant 0.000000e+00 : f32
    %120 = vector.broadcast %cst_72 : f32 to vector<2x64xf32>
    %121 = arith.select %100, %119, %120 : vector<2x64xi1>, vector<2x64xf32>
    %cst_73 = arith.constant dense<0.000000e+00> : vector<2xf32>
    %122 = vector.multi_reduction <add>, %121, %cst_73 [1] : vector<2x64xf32> to vector<2xf32>
    %123 = vector.shape_cast %122 : vector<2xf32> to vector<2x1xf32>
    %cst_74 = arith.constant 3.125000e-02 : f32
    %124 = vector.broadcast %cst_74 : f32 to vector<2x1xf32>
    %125 = arith.mulf %123, %124 : vector<2x1xf32>
    %cst_75 = arith.constant 0.000000e+00 : f32
    %126 = vector.broadcast %cst_75 : f32 to vector<2x64xf32>
    %127 = arith.select %100, %126, %119 : vector<2x64xi1>, vector<2x64xf32>
    %cst_76 = arith.constant dense<0.000000e+00> : vector<2xf32>
    %128 = vector.multi_reduction <add>, %127, %cst_76 [1] : vector<2x64xf32> to vector<2xf32>
    %129 = vector.shape_cast %128 : vector<2xf32> to vector<2x1xf32>
    %cst_77 = arith.constant 3.125000e-02 : f32
    %130 = vector.broadcast %cst_77 : f32 to vector<2x1xf32>
    %131 = arith.mulf %129, %130 : vector<2x1xf32>
    %cst_78 = arith.constant 9.99999974E-6 : f32
    %132 = vector.broadcast %cst_78 : f32 to vector<2x1xf32>
    %133 = arith.addf %125, %132 : vector<2x1xf32>
    %134 = math.rsqrt %133 : vector<2x1xf32>
    %cst_79 = arith.constant 9.99999974E-6 : f32
    %135 = vector.broadcast %cst_79 : f32 to vector<2x1xf32>
    %136 = arith.addf %131, %135 : vector<2x1xf32>
    %137 = math.rsqrt %136 : vector<2x1xf32>
    %138 = vector.shape_cast %134 : vector<2x1xf32> to vector<2x1xf32>
    %139 = vector.broadcast %138 : vector<2x1xf32> to vector<2x64xf32>
    %140 = vector.shape_cast %137 : vector<2x1xf32> to vector<2x1xf32>
    %141 = vector.broadcast %140 : vector<2x1xf32> to vector<2x64xf32>
    %142 = arith.select %100, %139, %141 : vector<2x64xi1>, vector<2x64xf32>
    %143 = arith.mulf %118, %142 : vector<2x64xf32>
    %c116 = arith.constant 116 : index
    %c0_80 = arith.constant 0 : index
    %144 = vector.load %arg2[%c116, %c0_80] : memref<632x64xf32, #tpu.memory_space<vmem>>, vector<1x64xf32>
    %145 = vector.broadcast %144 : vector<1x64xf32> to vector<2x64xf32>
    %146 = arith.mulf %143, %145 : vector<2x64xf32>
    %c117 = arith.constant 117 : index
    %c0_81 = arith.constant 0 : index
    %147 = vector.load %arg2[%c117, %c0_81] : memref<632x64xf32, #tpu.memory_space<vmem>>, vector<1x64xf32>
    %148 = vector.broadcast %147 : vector<1x64xf32> to vector<2x64xf32>
    %149 = arith.addf %146, %148 : vector<2x64xf32>
    %150 = math.tanh %149 : vector<2x64xf32>
    %c118 = arith.constant 118 : index
    %c0_82 = arith.constant 0 : index
    %151 = vector.load %arg2[%c118, %c0_82] : memref<632x64xf32, #tpu.memory_space<vmem>>, vector<1x64xf32>
    %152 = vector.broadcast %151 : vector<1x64xf32> to vector<2x64xf32>
    %153 = arith.mulf %150, %152 : vector<2x64xf32>
    %cst_83 = arith.constant 0.000000e+00 : f32
    %154 = vector.broadcast %cst_83 : f32 to vector<2x64xf32>
    %155 = arith.select %100, %153, %154 : vector<2x64xi1>, vector<2x64xf32>
    %cst_84 = arith.constant dense<0.000000e+00> : vector<2xf32>
    %156 = vector.multi_reduction <add>, %155, %cst_84 [1] : vector<2x64xf32> to vector<2xf32>
    %157 = vector.shape_cast %156 : vector<2xf32> to vector<2x1xf32>
    %c119 = arith.constant 119 : index
    %c0_85 = arith.constant 0 : index
    %158 = vector.load %arg2[%c119, %c0_85] : memref<632x64xf32, #tpu.memory_space<vmem>>, vector<1x1xf32>
    %159 = vector.broadcast %158 : vector<1x1xf32> to vector<2x1xf32>
    %160 = arith.addf %157, %159 : vector<2x1xf32>
    %cst_86 = arith.constant 0.000000e+00 : f32
    %161 = vector.broadcast %cst_86 : f32 to vector<2x64xf32>
    %162 = arith.select %100, %161, %153 : vector<2x64xi1>, vector<2x64xf32>
    %cst_87 = arith.constant dense<0.000000e+00> : vector<2xf32>
    %163 = vector.multi_reduction <add>, %162, %cst_87 [1] : vector<2x64xf32> to vector<2xf32>
    %164 = vector.shape_cast %163 : vector<2xf32> to vector<2x1xf32>
    %c119_88 = arith.constant 119 : index
    %c1 = arith.constant 1 : index
    %165 = vector.load %arg2[%c119_88, %c1] : memref<632x64xf32, #tpu.memory_space<vmem>>, vector<1x1xf32>
    %166 = vector.broadcast %165 : vector<1x1xf32> to vector<2x1xf32>
    %167 = arith.addf %164, %166 : vector<2x1xf32>
    %168 = tpu.iota {dimensions = array<i32: 1>} : vector<2x128xi32>
    %c0_i32 = arith.constant 0 : i32
    %169 = vector.broadcast %c0_i32 : i32 to vector<2x128xi32>
    %170 = arith.cmpi eq, %168, %169 : vector<2x128xi32>
    %c1_i32 = arith.constant 1 : i32
    %171 = vector.broadcast %c1_i32 : i32 to vector<2x128xi32>
    %172 = arith.cmpi eq, %168, %171 : vector<2x128xi32>
    %cst_89 = arith.constant 0.000000e+00 : f32
    %173 = vector.shape_cast %167 : vector<2x1xf32> to vector<2x1xf32>
    %174 = vector.broadcast %173 : vector<2x1xf32> to vector<2x128xf32>
    %175 = vector.broadcast %cst_89 : f32 to vector<2x128xf32>
    %176 = arith.select %172, %174, %175 : vector<2x128xi1>, vector<2x128xf32>
    %177 = vector.shape_cast %160 : vector<2x1xf32> to vector<2x1xf32>
    %178 = vector.broadcast %177 : vector<2x1xf32> to vector<2x128xf32>
    %179 = arith.select %170, %178, %176 : vector<2x128xi1>, vector<2x128xf32>
    %c0_90 = arith.constant 0 : index
    %c0_91 = arith.constant 0 : index
    %180 = vector.load %arg3[%c0_90, %c0_91] : memref<2x128xf32, #tpu.memory_space<vmem>>, vector<2x128xf32>
    tpu.vector_store %arg3[%c0_90, %c0_91], %179 {strides = array<i32>} : memref<2x128xf32, #tpu.memory_space<vmem>>, vector<2x128xf32>,
    return
  }
}

</mosaic_0001>

<llo_original>
// kernel: conv_critic_forward.1
$region0: #{conv_critic_forward.1}
  #allocation0 [shape = 'u32[]', space=smem, size = 0x4, offset = 0x4, fixed_abs, tag = 'smem constant byte address 0x4 - core index']
  #allocation1 [shape = 'u32[144,128]{1,0:T(1,128)}', space=vmem, size = 0x12000, scoped, tag = 'internal scratch']
  #allocation2 [shape = 'f32[32,32]{1,0:T(8,128)}', space=vmem, size = 0x4000, scoped, tag = 'scratch operand']
  #allocation3 [shape = 'f32[2,512]{1,0:T(2,128)}', space=vmem, size = 0x1000, scoped, tag = 'scratch operand']
  %s0 = inlined_call_operand.vmem [shape: f32[32,8], index: 0, kind: input, shape index: {}]
  %s1 = inlined_call_operand.vmem [shape: f32[2,4], index: 1, kind: input, shape index: {}]
  %s2 = inlined_call_operand.vmem [shape: f32[632,64], index: 2, kind: input, shape index: {}]
  %s3 = inlined_call_operand.vmem [shape: f32[2,128], index: 3, kind: output, shape index: {}]
  %s4 = sld [smem:[#allocation0]]
  $region22: #{conv_critic_forward.1} parent=0
    _
  %s6 = ssub.s32 1, %s4
  %s7 = scalar_select 0, %s6, %s4
  // Predicated region
  $region2: #{conv_critic_forward.1} parent=0 // pred_check
    _
  $region3: #{conv_critic_forward.1} parent=0 // pred_check_branch
    %9 = sbr.rel (0) target = $region5
  $region4: #{conv_critic_forward.1} parent=0 // pred_region
    _
  $region5: #{conv_critic_forward.1} parent=0 // pred_fallthru
    _
  // Predicated region
  $region6: #{conv_critic_forward.1} parent=0 // pred_check
    _
  $region7: #{conv_critic_forward.1} parent=0 // pred_check_branch
    %11 = sbr.rel (0) target = $region9
  $region8: #{conv_critic_forward.1} parent=0 // pred_region
    _
  $region9: #{conv_critic_forward.1} parent=0 // pred_fallthru
    _
  // Predicated region
  $region10: #{conv_critic_forward.1} parent=0 // pred_check
    _
  $region11: #{conv_critic_forward.1} parent=0 // pred_check_branch
    %13 = sbr.rel (0) target = $region13
  $region12: #{conv_critic_forward.1} parent=0 // pred_region
    _
  $region13: #{conv_critic_forward.1} parent=0 // pred_fallthru
    _
  %v14 = vld [vmem:[%s0] sm:$0xff]
  %v15 = vld [vmem:[%s0 + $0x8] sm:$0xff]
  %v16 = vld [vmem:[%s0 + $0x10] sm:$0xff]
  %v17 = vld [vmem:[%s0 + $0x18] sm:$0xff]
  %v18 = vld [vmem:[%s2] sm:$0xff]
  %v19 = vld [vmem:[%s2 + $0x70] sm:$0x1]
  %v20 = vlaneseq
  %v21 = vshrl.u32 %v20, 7
  %v22 = vsub.s32 0, %v21
  %v23 = vrot.slane %v19, %v22
  %vm24 = vcmask 64512
  %v26 = vsel %vm24, %v14, 0
  %v29 = vsel %vm24, %v15, 0
  %v32 = vsel %vm24, %v16, 0
  %v35 = vsel %vm24, %v17, 0
  %37 = vmatprep.subr.mxu0 0.0
  %38 = vmatpush1.msra.mxu0 %v18
  %39 = vmatprep.subr.mxu0 0.0
  %40 = vmatpush1.msra.mxu0 0.0
  %41 = vmatprep.subr.mxu0 0.0
  %42 = vmatpush1.msra.mxu0 0.0
  %43 = vmatprep.subr.mxu0 0.0
  %44 = vmatpush1.msra.mxu0 0.0
  %45 = vmatprep.subr.mxu0 0.0
  %46 = vmatpush1.msra.mxu0 0.0
  %47 = vmatprep.subr.mxu0 0.0
  %48 = vmatpush1.msra.mxu0 0.0
  %49 = vmatprep.subr.mxu0 0.0
  %50 = vmatpush1.msra.mxu0 0.0
  %51 = vmatprep.subr.mxu0 0.0
  %52 = vmatpush1.msra.mxu0 0.0
  %53 = vmatprep.subr.mxu0 0.0
  %54 = vmatpush1.msra.mxu0 0.0
  %55 = vmatprep.subr.mxu0 0.0
  %56 = vmatpush1.msra.mxu0 0.0
  %57 = vmatprep.subr.mxu0 0.0
  %58 = vmatpush1.msra.mxu0 0.0
  %59 = vmatprep.subr.mxu0 0.0
  %60 = vmatpush1.msra.mxu0 0.0
  %61 = vmatprep.subr.mxu0 0.0
  %62 = vmatpush1.msra.mxu0 0.0
  %63 = vmatprep.subr.mxu0 0.0
  %64 = vmatpush1.msra.mxu0 0.0
  %65 = vmatprep.subr.mxu0 0.0
  %66 = vmatpush1.msra.mxu0 0.0
  %67 = vmatprep.subr.mxu0 0.0
  %68 = vmatpush1.msra.mxu0 0.0
  %69 = vmatprep.subr.mxu0 0.0
  %70 = vmatpush1.msra.mxu0 0.0
  %71 = vmatprep.subr.mxu0 0.0
  %72 = vmatpush1.msra.mxu0 0.0
  %73 = vmatprep.subr.mxu0 0.0
  %74 = vmatpush1.msra.mxu0 0.0
  %75 = vmatprep.subr.mxu0 0.0
  %76 = vmatpush1.msra.mxu0 0.0
  %77 = vmatprep.subr.mxu0 0.0
  %78 = vmatpush1.msra.mxu0 0.0
  %79 = vmatprep.subr.mxu0 0.0
  %80 = vmatpush1.msra.mxu0 0.0
  %81 = vmatprep.subr.mxu0 0.0
  %82 = vmatpush1.msra.mxu0 0.0
  %83 = vmatprep.subr.mxu0 0.0
  %84 = vmatpush1.msra.mxu0 0.0
  %85 = vmatprep.subr.mxu0 0.0
  %86 = vmatpush1.msra.mxu0 0.0
  %87 = vmatprep.subr.mxu0 0.0
  %88 = vmatpush1.msra.mxu0 0.0
  %89 = vmatprep.subr.mxu0 0.0
  %90 = vmatpush1.msra.mxu0 0.0
  %91 = vmatprep.subr.mxu0 0.0
  %92 = vmatpush1.msra.mxu0 0.0
  %93 = vmatprep.subr.mxu0 0.0
  %94 = vmatpush1.msra.mxu0 0.0
  %95 = vmatprep.subr.mxu0 0.0
  %96 = vmatpush1.msra.mxu0 0.0
  %97 = vmatprep.subr.mxu0 0.0
  %98 = vmatpush1.msra.mxu0 0.0
  %99 = vmatprep.subr.mxu0 0.0
  %100 = vmatpush1.msra.mxu0 0.0
  %101 = vmatprep.mubr.f32.mxu0 0.0
  %102 = vmatmul.mubr.f32.gmra.mrb[0].mxu0 %v26
  %v103 = vpop.f32.mrb[0].mxu0
  %v104 = vadd.f32 %v23, %v103
  %v105 = vpop.f32.mrb[0].mxu0
  %106 = vmatprep.mubr.f32.mxu0 0.0
  %107 = vmatmul.mubr.f32.gmra.mrb[0].mxu0 %v29
  %v108 = vpop.f32.mrb[0].mxu0
  %v109 = vadd.f32 %v23, %v108
  %v110 = vpop.f32.mrb[0].mxu0
  %111 = vmatprep.mubr.f32.mxu0 0.0
  %112 = vmatmul.mubr.f32.gmra.mrb[0].mxu0 %v32
  %v113 = vpop.f32.mrb[0].mxu0
  %v114 = vadd.f32 %v23, %v113
  %v115 = vpop.f32.mrb[0].mxu0
  %116 = vmatprep.mubr.f32.mxu0 0.0
  %117 = vmatmul.mubr.f32.gmra.mrb[0].mxu0 %v35
  %v118 = vpop.f32.mrb[0].mxu0
  %v119 = vadd.f32 %v23, %v118
  %v120 = vpop.f32.mrb[0].mxu0
  %121 = vdwg.mxu0
  %v122 = vtanh.pop %v104
  %v123 = vtanh.pop %v109
  %v124 = vtanh.pop %v114
  %v125 = vtanh.pop %v119
  %v126 = vld [vmem:[%s2 + $0x8] sm:$0xff]
  %v127 = vld [vmem:[%s2 + $0x10] sm:$0xff]
  %v128 = vld [vmem:[%s2 + $0x18] sm:$0xff]
  %v129 = vld [vmem:[%s2 + $0x20] sm:$0xff]
  %v130 = vld [vmem:[%s2 + $0x28] sm:$0xff]
  %v131 = vld [vmem:[%s2 + $0x30] sm:$0xff]
  %v132 = vld [vmem:[%s2 + $0x38] sm:$0xff]
  %v133 = vld [vmem:[%s2 + $0x40] sm:$0xff]
  %v134 = vld [vmem:[%s2 + $0x71] sm:$0x1]
  %v135 = vlaneseq
  %v136 = vshrl.u32 %v135, 7
  %v137 = vsub.s32 0, %v136
  %v138 = vrot.slane %v134, %v137
  %vm139 = vcmask 523264
  %v141 = vsel %vm139, %v122, 0
  %v144 = vsel %vm139, %v123, 0
  %v147 = vsel %vm139, %v124, 0
  %v150 = vsel %vm139, %v125, 0
  %152 = vmatprep.subr.mxu0 0.0
  %153 = vmatpush1.msra.mxu0 %v126
  %154 = vmatprep.subr.mxu0 0.0
  %155 = vmatpush1.msra.mxu0 %v127
  %156 = vmatprep.subr.mxu0 0.0
  %157 = vmatpush1.msra.mxu0 %v128
  %158 = vmatprep.subr.mxu0 0.0
  %159 = vmatpush1.msra.mxu0 %v129
  %160 = vmatprep.subr.mxu0 0.0
  %161 = vmatpush1.msra.mxu0 %v130
  %162 = vmatprep.subr.mxu0 0.0
  %163 = vmatpush1.msra.mxu0 %v131
  %164 = vmatprep.subr.mxu0 0.0
  %165 = vmatpush1.msra.mxu0 %v132
  %166 = vmatprep.subr.mxu0 0.0
  %167 = vmatpush1.msra.mxu0 %v133
  %168 = vmatprep.subr.mxu0 0.0
  %169 = vmatpush1.msra.mxu0 0.0
  %170 = vmatprep.subr.mxu0 0.0
  %171 = vmatpush1.msra.mxu0 0.0
  %172 = vmatprep.subr.mxu0 0.0
  %173 = vmatpush1.msra.mxu0 0.0
  %174 = vmatprep.subr.mxu0 0.0
  %175 = vmatpush1.msra.mxu0 0.0
  %176 = vmatprep.subr.mxu0 0.0
  %177 = vmatpush1.msra.mxu0 0.0
  %178 = vmatprep.subr.mxu0 0.0
  %179 = vmatpush1.msra.mxu0 0.0
  %180 = vmatprep.subr.mxu0 0.0
  %181 = vmatpush1.msra.mxu0 0.0
  %182 = vmatprep.subr.mxu0 0.0
  %183 = vmatpush1.msra.mxu0 0.0
  %184 = vmatprep.subr.mxu0 0.0
  %185 = vmatpush1.msra.mxu0 0.0
  %186 = vmatprep.subr.mxu0 0.0
  %187 = vmatpush1.msra.mxu0 0.0
  %188 = vmatprep.subr.mxu0 0.0
  %189 = vmatpush1.msra.mxu0 0.0
  %190 = vmatprep.subr.mxu0 0.0
  %191 = vmatpush1.msra.mxu0 0.0
  %192 = vmatprep.subr.mxu0 0.0
  %193 = vmatpush1.msra.mxu0 0.0
  %194 = vmatprep.subr.mxu0 0.0
  %195 = vmatpush1.msra.mxu0 0.0
  %196 = vmatprep.subr.mxu0 0.0
  %197 = vmatpush1.msra.mxu0 0.0
  %198 = vmatprep.subr.mxu0 0.0
  %199 = vmatpush1.msra.mxu0 0.0
  %200 = vmatprep.subr.mxu0 0.0
  %201 = vmatpush1.msra.mxu0 0.0
  %202 = vmatprep.subr.mxu0 0.0
  %203 = vmatpush1.msra.mxu0 0.0
  %204 = vmatprep.subr.mxu0 0.0
  %205 = vmatpush1.msra.mxu0 0.0
  %206 = vmatprep.subr.mxu0 0.0
  %207 = vmatpush1.msra.mxu0 0.0
  %208 = vmatprep.subr.mxu0 0.0
  %209 = vmatpush1.msra.mxu0 0.0
  %210 = vmatprep.subr.mxu0 0.0
  %211 = vmatpush1.msra.mxu0 0.0
  %212 = vmatprep.subr.mxu0 0.0
  %213 = vmatpush1.msra.mxu0 0.0
  %214 = vmatprep.subr.mxu0 0.0
  %215 = vmatpush1.msra.mxu0 0.0
  %216 = vmatprep.mubr.f32.mxu0 0.0
  %217 = vmatmul.mubr.f32.gmra.mrb[0].mxu0 %v141
  %v218 = vpop.f32.mrb[0].mxu0
  %v219 = vadd.f32 %v138, %v218
  %v220 = vpop.f32.mrb[0].mxu0
  %221 = vmatprep.mubr.f32.mxu0 0.0
  %222 = vmatmul.mubr.f32.gmra.mrb[0].mxu0 %v144
  %v223 = vpop.f32.mrb[0].mxu0
  %v224 = vadd.f32 %v138, %v223
  %v225 = vpop.f32.mrb[0].mxu0
  %226 = vmatprep.mubr.f32.mxu0 0.0
  %227 = vmatmul.mubr.f32.gmra.mrb[0].mxu0 %v147
  %v228 = vpop.f32.mrb[0].mxu0
  %v229 = vadd.f32 %v138, %v228
  %v230 = vpop.f32.mrb[0].mxu0
  %231 = vmatprep.mubr.f32.mxu0 0.0
  %232 = vmatmul.mubr.f32.gmra.mrb[0].mxu0 %v150
  %v233 = vpop.f32.mrb[0].mxu0
  %v234 = vadd.f32 %v138, %v233
  %v235 = vpop.f32.mrb[0].mxu0
  %236 = vdwg.mxu0
  %v237 = vtanh.pop %v219
  %v238 = vtanh.pop %v224
  %v239 = vtanh.pop %v229
  %v240 = vtanh.pop %v234
  %vm241 = vcmask 261120
  %242 = vst.msk [vmem:[#allocation2] sm:$0xff] %vm241, %v237
  %243 = vst.msk [vmem:[#allocation2 + $0x8] sm:$0xff] %vm241, %v238
  %244 = vst.msk [vmem:[#allocation2 + $0x10] sm:$0xff] %vm241, %v239
  %245 = vst.msk [vmem:[#allocation2 + $0x18] sm:$0xff] %vm241, %v240
  %v246 = vld [vmem:[#allocation2] sm:$0x3]
  %vm247 = vcmask 254976
  %248 = vst.msk [vmem:[#allocation3] sm:$0x3] %vm247, %v246
  %v249 = vld [vmem:[#allocation2 + $0x2] sm:$0x3]
  %v252 = vunpack.c.l.s4 1983009808
  %v253 = vunpack.c.0.s8 %v252
  %v254 = vlaneseq
  %v255 = vshrl.u32 %v254, 7
  %v256 = vsub.s32 %v253, %v255
  %v257 = vrot.slane %v249, %v256
  %258 = vrot.lane.b32.xlu0 %v257, 32
  %v259 = vpop.permute.xlu0 %258
  %vm261 = vcmask 517376
  %262 = vst.msk [vmem:[#allocation3] sm:$0x3] %vm261, %v259
  %v263 = vld [vmem:[#allocation2 + $0x4] sm:$0x3]
  %v266 = vunpack.c.l.s4 1983009808
  %v267 = vunpack.c.0.s8 %v266
  %v268 = vlaneseq
  %v269 = vshrl.u32 %v268, 7
  %v270 = vsub.s32 %v267, %v269
  %v271 = vrot.slane %v263, %v270
  %272 = vrot.lane.b32.xlu0 %v271, 64
  %v273 = vpop.permute.xlu0 %272
  %vm275 = vcmask 779776
  %276 = vst.msk [vmem:[#allocation3] sm:$0x3] %vm275, %v273
  %v277 = vld [vmem:[#allocation2 + $0x6] sm:$0x3]
  %v280 = vunpack.c.l.s4 1983009808
  %v281 = vunpack.c.0.s8 %v280
  %v282 = vlaneseq
  %v283 = vshrl.u32 %v282, 7
  %v284 = vsub.s32 %v281, %v283
  %v285 = vrot.slane %v277, %v284
  %286 = vrot.lane.b32.xlu0 %v285, 96
  %v287 = vpop.permute.xlu0 %286
  %vm289 = vcmask 1042176
  %290 = vst.msk [vmem:[#allocation3] sm:$0x3] %vm289, %v287
  %v291 = vld [vmem:[#allocation2 + $0x8] sm:$0x3]
  %292 = vst.msk [vmem:[#allocation3 + $0x2] sm:$0x3] %vm247, %v291
  %v293 = vld [vmem:[#allocation2 + $0xa] sm:$0x3]
  %v296 = vunpack.c.l.s4 1983009808
  %v297 = vunpack.c.0.s8 %v296
  %v298 = vlaneseq
  %v299 = vshrl.u32 %v298, 7
  %v300 = vsub.s32 %v297, %v299
  %v301 = vrot.slane %v293, %v300
  %302 = vrot.lane.b32.xlu0 %v301, 32
  %v303 = vpop.permute.xlu0 %302
  %305 = vst.msk [vmem:[#allocation3 + $0x2] sm:$0x3] %vm261, %v303
  %v306 = vld [vmem:[#allocation2 + $0xc] sm:$0x3]
  %v309 = vunpack.c.l.s4 1983009808
  %v310 = vunpack.c.0.s8 %v309
  %v311 = vlaneseq
  %v312 = vshrl.u32 %v311, 7
  %v313 = vsub.s32 %v310, %v312
  %v314 = vrot.slane %v306, %v313
  %315 = vrot.lane.b32.xlu0 %v314, 64
  %v316 = vpop.permute.xlu0 %315
  %318 = vst.msk [vmem:[#allocation3 + $0x2] sm:$0x3] %vm275, %v316
  %v319 = vld [vmem:[#allocation2 + $0xe] sm:$0x3]
  %v322 = vunpack.c.l.s4 1983009808
  %v323 = vunpack.c.0.s8 %v322
  %v324 = vlaneseq
  %v325 = vshrl.u32 %v324, 7
  %v326 = vsub.s32 %v323, %v325
  %v327 = vrot.slane %v319, %v326
  %328 = vrot.lane.b32.xlu0 %v327, 96
  %v329 = vpop.permute.xlu0 %328
  %331 = vst.msk [vmem:[#allocation3 + $0x2] sm:$0x3] %vm289, %v329
  %v332 = vld [vmem:[#allocation2 + $0x10] sm:$0x3]
  %333 = vst.msk [vmem:[#allocation3 + $0x4] sm:$0x3] %vm247, %v332
  %v334 = vld [vmem:[#allocation2 + $0x12] sm:$0x3]
  %v337 = vunpack.c.l.s4 1983009808
  %v338 = vunpack.c.0.s8 %v337
  %v339 = vlaneseq
  %v340 = vshrl.u32 %v339, 7
  %v341 = vsub.s32 %v338, %v340
  %v342 = vrot.slane %v334, %v341
  %343 = vrot.lane.b32.xlu0 %v342, 32
  %v344 = vpop.permute.xlu0 %343
  %346 = vst.msk [vmem:[#allocation3 + $0x4] sm:$0x3] %vm261, %v344
  %v347 = vld [vmem:[#allocation2 + $0x14] sm:$0x3]
  %v350 = vunpack.c.l.s4 1983009808
  %v351 = vunpack.c.0.s8 %v350
  %v352 = vlaneseq
  %v353 = vshrl.u32 %v352, 7
  %v354 = vsub.s32 %v351, %v353
  %v355 = vrot.slane %v347, %v354
  %356 = vrot.lane.b32.xlu0 %v355, 64
  %v357 = vpop.permute.xlu0 %356
  %359 = vst.msk [vmem:[#allocation3 + $0x4] sm:$0x3] %vm275, %v357
  %v360 = vld [vmem:[#allocation2 + $0x16] sm:$0x3]
  %v363 = vunpack.c.l.s4 1983009808
  %v364 = vunpack.c.0.s8 %v363
  %v365 = vlaneseq
  %v366 = vshrl.u32 %v365, 7
  %v367 = vsub.s32 %v364, %v366
  %v368 = vrot.slane %v360, %v367
  %369 = vrot.lane.b32.xlu0 %v368, 96
  %v370 = vpop.permute.xlu0 %369
  %372 = vst.msk [vmem:[#allocation3 + $0x4] sm:$0x3] %vm289, %v370
  %v373 = vld [vmem:[#allocation2 + $0x18] sm:$0x3]
  %374 = vst.msk [vmem:[#allocation3 + $0x6] sm:$0x3] %vm247, %v373
  %v375 = vld [vmem:[#allocation2 + $0x1a] sm:$0x3]
  %v378 = vunpack.c.l.s4 1983009808
  %v379 = vunpack.c.0.s8 %v378
  %v380 = vlaneseq
  %v381 = vshrl.u32 %v380, 7
  %v382 = vsub.s32 %v379, %v381
  %v383 = vrot.slane %v375, %v382
  %384 = vrot.lane.b32.xlu0 %v383, 32
  %v385 = vpop.permute.xlu0 %384
  %387 = vst.msk [vmem:[#allocation3 + $0x6] sm:$0x3] %vm261, %v385
  %v388 = vld [vmem:[#allocation2 + $0x1c] sm:$0x3]
  %v391 = vunpack.c.l.s4 1983009808
  %v392 = vunpack.c.0.s8 %v391
  %v393 = vlaneseq
  %v394 = vshrl.u32 %v393, 7
  %v395 = vsub.s32 %v392, %v394
  %v396 = vrot.slane %v388, %v395
  %397 = vrot.lane.b32.xlu0 %v396, 64
  %v398 = vpop.permute.xlu0 %397
  %400 = vst.msk [vmem:[#allocation3 + $0x6] sm:$0x3] %vm275, %v398
  %v401 = vld [vmem:[#allocation2 + $0x1e] sm:$0x3]
  %v404 = vunpack.c.l.s4 1983009808
  %v405 = vunpack.c.0.s8 %v404
  %v406 = vlaneseq
  %v407 = vshrl.u32 %v406, 7
  %v408 = vsub.s32 %v405, %v407
  %v409 = vrot.slane %v401, %v408
  %410 = vrot.lane.b32.xlu0 %v409, 96
  %v411 = vpop.permute.xlu0 %410
  %413 = vst.msk [vmem:[#allocation3 + $0x6] sm:$0x3] %vm289, %v411
  %v414 = vld [vmem:[#allocation3] sm:$0xff]
  %v415 = vld [vmem:[%s2 + $0x78] sm:$0xff]
  %v416 = vld [vmem:[%s2 + $0x80] sm:$0xff]
  %v417 = vld [vmem:[%s2 + $0x88] sm:$0xff]
  %v418 = vld [vmem:[%s2 + $0x90] sm:$0xff]
  %v419 = vld [vmem:[%s2 + $0x98] sm:$0xff]
  %v420 = vld [vmem:[%s2 + $0xa0] sm:$0xff]
  %v421 = vld [vmem:[%s2 + $0xa8] sm:$0xff]
  %v422 = vld [vmem:[%s2 + $0xb0] sm:$0xff]
  %v423 = vld [vmem:[%s2 + $0xb8] sm:$0xff]
  %v424 = vld [vmem:[%s2 + $0xc0] sm:$0xff]
  %v425 = vld [vmem:[%s2 + $0xc8] sm:$0xff]
  %v426 = vld [vmem:[%s2 + $0xd0] sm:$0xff]
  %v427 = vld [vmem:[%s2 + $0xd8] sm:$0xff]
  %v428 = vld [vmem:[%s2 + $0xe0] sm:$0xff]
  %v429 = vld [vmem:[%s2 + $0xe8] sm:$0xff]
  %v430 = vld [vmem:[%s2 + $0xf0] sm:$0xff]
  %v431 = vld [vmem:[%s2 + $0xf8] sm:$0xff]
  %v432 = vld [vmem:[%s2 + $0x100] sm:$0xff]
  %v433 = vld [vmem:[%s2 + $0x108] sm:$0xff]
  %v434 = vld [vmem:[%s2 + $0x110] sm:$0xff]
  %v435 = vld [vmem:[%s2 + $0x118] sm:$0xff]
  %v436 = vld [vmem:[%s2 + $0x120] sm:$0xff]
  %v437 = vld [vmem:[%s2 + $0x128] sm:$0xff]
  %v438 = vld [vmem:[%s2 + $0x130] sm:$0xff]
  %v439 = vld [vmem:[%s2 + $0x138] sm:$0xff]
  %v440 = vld [vmem:[%s2 + $0x140] sm:$0xff]
  %v441 = vld [vmem:[%s2 + $0x148] sm:$0xff]
  %v442 = vld [vmem:[%s2 + $0x150] sm:$0xff]
  %v443 = vld [vmem:[%s2 + $0x158] sm:$0xff]
  %v444 = vld [vmem:[%s2 + $0x160] sm:$0xff]
  %v445 = vld [vmem:[%s2 + $0x168] sm:$0xff]
  %v446 = vld [vmem:[%s2 + $0x170] sm:$0xff]
  %v447 = vld [vmem:[%s2 + $0x178] sm:$0xff]
  %v448 = vld [vmem:[%s2 + $0x180] sm:$0xff]
  %v449 = vld [vmem:[%s2 + $0x188] sm:$0xff]
  %v450 = vld [vmem:[%s2 + $0x190] sm:$0xff]
  %v451 = vld [vmem:[%s2 + $0x198] sm:$0xff]
  %v452 = vld [vmem:[%s2 + $0x1a0] sm:$0xff]
  %v453 = vld [vmem:[%s2 + $0x1a8] sm:$0xff]
  %v454 = vld [vmem:[%s2 + $0x1b0] sm:$0xff]
  %v455 = vld [vmem:[%s2 + $0x1b8] sm:$0xff]
  %v456 = vld [vmem:[%s2 + $0x1c0] sm:$0xff]
  %v457 = vld [vmem:[%s2 + $0x1c8] sm:$0xff]
  %v458 = vld [vmem:[%s2 + $0x1d0] sm:$0xff]
  %v459 = vld [vmem:[%s2 + $0x1d8] sm:$0xff]
  %v460 = vld [vmem:[%s2 + $0x1e0] sm:$0xff]
  %v461 = vld [vmem:[%s2 + $0x1e8] sm:$0xff]
  %v462 = vld [vmem:[%s2 + $0x1f0] sm:$0xff]
  %v463 = vld [vmem:[%s2 + $0x1f8] sm:$0xff]
  %v464 = vld [vmem:[%s2 + $0x200] sm:$0xff]
  %v465 = vld [vmem:[%s2 + $0x208] sm:$0xff]
  %v466 = vld [vmem:[%s2 + $0x210] sm:$0xff]
  %v467 = vld [vmem:[%s2 + $0x218] sm:$0xff]
  %v468 = vld [vmem:[%s2 + $0x220] sm:$0xff]
  %v469 = vld [vmem:[%s2 + $0x228] sm:$0xff]
  %v470 = vld [vmem:[%s2 + $0x230] sm:$0xff]
  %v471 = vld [vmem:[%s2 + $0x238] sm:$0xff]
  %v472 = vld [vmem:[%s2 + $0x240] sm:$0xff]
  %v473 = vld [vmem:[%s2 + $0x248] sm:$0xff]
  %v474 = vld [vmem:[%s2 + $0x250] sm:$0xff]
  %v475 = vld [vmem:[%s2 + $0x258] sm:$0xff]
  %v476 = vld [vmem:[%s2 + $0x260] sm:$0xff]
  %v477 = vld [vmem:[%s2 + $0x268] sm:$0xff]
  %v478 = vld [vmem:[%s2 + $0x270] sm:$0xff]
  %v479 = vld [vmem:[%s2 + $0x72] sm:$0x1]
  %v480 = vlaneseq
  %v481 = vshrl.u32 %v480, 7
  %v482 = vsub.s32 0, %v481
  %v483 = vrot.slane %v479, %v482
  %v485 = vcombine.high %v414, %v414
  %v487 = vunpack.c.l.s4 1983009808
  %v488 = vunpack.c.0.s8 %v487
  %v489 = vlaneseq
  %v490 = vshrl.u32 %v489, 7
  %v491 = vsub.s32 %v488, %v490
  %v492 = vrot.slane %v414, %v491
  %v494 = vunpack.c.l.s4 1983009808
  %v495 = vunpack.c.0.s8 %v494
  %v496 = vlaneseq
  %v497 = vshrl.u32 %v496, 7
  %v498 = vsub.s32 %v495, %v497
  %v499 = vrot.slane %v485, %v498
  %v500 = vcombine.high %v492, %v492
  %v501 = vcombine.high %v499, %v499
  %506 = vmatprep.subr.mxu0 0.0
  %507 = vmatpush1.msra.mxu0 %v415
  %508 = vmatprep.subr.mxu0 0.0
  %509 = vmatpush1.msra.mxu0 %v416
  %510 = vmatprep.subr.mxu0 0.0
  %511 = vmatpush1.msra.mxu0 %v417
  %512 = vmatprep.subr.mxu0 0.0
  %513 = vmatpush1.msra.mxu0 %v418
  %514 = vmatprep.subr.mxu0 0.0
  %515 = vmatpush1.msra.mxu0 %v419
  %516 = vmatprep.subr.mxu0 0.0
  %517 = vmatpush1.msra.mxu0 %v420
  %518 = vmatprep.subr.mxu0 0.0
  %519 = vmatpush1.msra.mxu0 %v421
  %520 = vmatprep.subr.mxu0 0.0
  %521 = vmatpush1.msra.mxu0 %v422
  %522 = vmatprep.subr.mxu0 0.0
  %523 = vmatpush1.msra.mxu0 %v423
  %524 = vmatprep.subr.mxu0 0.0
  %525 = vmatpush1.msra.mxu0 %v424
  %526 = vmatprep.subr.mxu0 0.0
  %527 = vmatpush1.msra.mxu0 %v425
  %528 = vmatprep.subr.mxu0 0.0
  %529 = vmatpush1.msra.mxu0 %v426
  %530 = vmatprep.subr.mxu0 0.0
  %531 = vmatpush1.msra.mxu0 %v427
  %532 = vmatprep.subr.mxu0 0.0
  %533 = vmatpush1.msra.mxu0 %v428
  %534 = vmatprep.subr.mxu0 0.0
  %535 = vmatpush1.msra.mxu0 %v429
  %536 = vmatprep.subr.mxu0 0.0
  %537 = vmatpush1.msra.mxu0 %v430
  %538 = vmatprep.subr.mxu0 0.0
  %539 = vmatpush1.msra.mxu0 %v431
  %540 = vmatprep.subr.mxu0 0.0
  %541 = vmatpush1.msra.mxu0 %v432
  %542 = vmatprep.subr.mxu0 0.0
  %543 = vmatpush1.msra.mxu0 %v433
  %544 = vmatprep.subr.mxu0 0.0
  %545 = vmatpush1.msra.mxu0 %v434
  %546 = vmatprep.subr.mxu0 0.0
  %547 = vmatpush1.msra.mxu0 %v435
  %548 = vmatprep.subr.mxu0 0.0
  %549 = vmatpush1.msra.mxu0 %v436
  %550 = vmatprep.subr.mxu0 0.0
  %551 = vmatpush1.msra.mxu0 %v437
  %552 = vmatprep.subr.mxu0 0.0
  %553 = vmatpush1.msra.mxu0 %v438
  %554 = vmatprep.subr.mxu0 0.0
  %555 = vmatpush1.msra.mxu0 %v439
  %556 = vmatprep.subr.mxu0 0.0
  %557 = vmatpush1.msra.mxu0 %v440
  %558 = vmatprep.subr.mxu0 0.0
  %559 = vmatpush1.msra.mxu0 %v441
  %560 = vmatprep.subr.mxu0 0.0
  %561 = vmatpush1.msra.mxu0 %v442
  %562 = vmatprep.subr.mxu0 0.0
  %563 = vmatpush1.msra.mxu0 %v443
  %564 = vmatprep.subr.mxu0 0.0
  %565 = vmatpush1.msra.mxu0 %v444
  %566 = vmatprep.subr.mxu0 0.0
  %567 = vmatpush1.msra.mxu0 %v445
  %568 = vmatprep.subr.mxu0 0.0
  %569 = vmatpush1.msra.mxu0 %v446
  %570 = vmatprep.mubr.f32.mxu0 %v500
  %571 = vmatmul.mubr.f32.gmra.mrb[0].mxu0 %v492
  %v572 = vpop.f32.mrb[0].mxu0
  %v573 = vadd.f32 %v483, %v572
  %v574 = vpop.f32.mrb[0].mxu0
  %575 = vdwg.mxu0
  %576 = vmatprep.subr.mxu0 0.0
  %577 = vmatpush1.msra.mxu0 %v447
  %578 = vmatprep.subr.mxu0 0.0
  %579 = vmatpush1.msra.mxu0 %v448
  %580 = vmatprep.subr.mxu0 0.0
  %581 = vmatpush1.msra.mxu0 %v449
  %582 = vmatprep.subr.mxu0 0.0
  %583 = vmatpush1.msra.mxu0 %v450
  %584 = vmatprep.subr.mxu0 0.0
  %585 = vmatpush1.msra.mxu0 %v451
  %586 = vmatprep.subr.mxu0 0.0
  %587 = vmatpush1.msra.mxu0 %v452
  %588 = vmatprep.subr.mxu0 0.0
  %589 = vmatpush1.msra.mxu0 %v453
  %590 = vmatprep.subr.mxu0 0.0
  %591 = vmatpush1.msra.mxu0 %v454
  %592 = vmatprep.subr.mxu0 0.0
  %593 = vmatpush1.msra.mxu0 %v455
  %594 = vmatprep.subr.mxu0 0.0
  %595 = vmatpush1.msra.mxu0 %v456
  %596 = vmatprep.subr.mxu0 0.0
  %597 = vmatpush1.msra.mxu0 %v457
  %598 = vmatprep.subr.mxu0 0.0
  %599 = vmatpush1.msra.mxu0 %v458
  %600 = vmatprep.subr.mxu0 0.0
  %601 = vmatpush1.msra.mxu0 %v459
  %602 = vmatprep.subr.mxu0 0.0
  %603 = vmatpush1.msra.mxu0 %v460
  %604 = vmatprep.subr.mxu0 0.0
  %605 = vmatpush1.msra.mxu0 %v461
  %606 = vmatprep.subr.mxu0 0.0
  %607 = vmatpush1.msra.mxu0 %v462
  %608 = vmatprep.subr.mxu0 0.0
  %609 = vmatpush1.msra.mxu0 %v463
  %610 = vmatprep.subr.mxu0 0.0
  %611 = vmatpush1.msra.mxu0 %v464
  %612 = vmatprep.subr.mxu0 0.0
  %613 = vmatpush1.msra.mxu0 %v465
  %614 = vmatprep.subr.mxu0 0.0
  %615 = vmatpush1.msra.mxu0 %v466
  %616 = vmatprep.subr.mxu0 0.0
  %617 = vmatpush1.msra.mxu0 %v467
  %618 = vmatprep.subr.mxu0 0.0
  %619 = vmatpush1.msra.mxu0 %v468
  %620 = vmatprep.subr.mxu0 0.0
  %621 = vmatpush1.msra.mxu0 %v469
  %622 = vmatprep.subr.mxu0 0.0
  %623 = vmatpush1.msra.mxu0 %v470
  %624 = vmatprep.subr.mxu0 0.0
  %625 = vmatpush1.msra.mxu0 %v471
  %626 = vmatprep.subr.mxu0 0.0
  %627 = vmatpush1.msra.mxu0 %v472
  %628 = vmatprep.subr.mxu0 0.0
  %629 = vmatpush1.msra.mxu0 %v473
  %630 = vmatprep.subr.mxu0 0.0
  %631 = vmatpush1.msra.mxu0 %v474
  %632 = vmatprep.subr.mxu0 0.0
  %633 = vmatpush1.msra.mxu0 %v475
  %634 = vmatprep.subr.mxu0 0.0
  %635 = vmatpush1.msra.mxu0 %v476
  %636 = vmatprep.subr.mxu0 0.0
  %637 = vmatpush1.msra.mxu0 %v477
  %638 = vmatprep.subr.mxu0 0.0
  %639 = vmatpush1.msra.mxu0 %v478
  %640 = vmatprep.mubr.f32.mxu0 %v501
  %641 = vmatmul.mubr.f32.gmra.mrb[0].mxu0 %v499
  %v642 = vpop.f32.mrb[0].mxu0
  %v643 = vadd.f32 %v573, %v642
  %v644 = vpop.f32.mrb[0].mxu0
  %645 = vdwg.mxu0
  %v646 = vtanh.pop %v643
  %v647 = vsel %vm247, %v646, 0.0
  %v648 = vrot.slane %v647, 4
  %v649 = vadd.f32 %v647, %v648
  %v650 = vrot.slane %v649, 2
  %v651 = vadd.f32 %v649, %v650
  %v652 = vrot.slane %v651, 1
  %v653 = vadd.f32 %v651, %v652
  %v654 = vrcp.pop 2.0
  %v655 = vmul.f32 %v653, %v654
  %v656 = vsub.f32 %v646, %v655
  %v657 = vmul.f32 %v656, %v656
  %v658 = vsel %vm247, %v657, 0.0
  %v659 = vrot.slane %v658, 4
  %v660 = vadd.f32 %v658, %v659
  %v661 = vrot.slane %v660, 2
  %v662 = vadd.f32 %v660, %v661
  %v663 = vrot.slane %v662, 1
  %v664 = vadd.f32 %v662, %v663
  %v665 = vmul.f32 %v664, %v654
  %v666 = vadd.f32 %v665, 1e-05
  %v667 = vrsqrt.pop %v666
  %v668 = vmul.f32 %v656, %v667
  %v669 = vld [vmem:[%s1] sm:$0x3]
  %vm670 = vcmask 25600
  %v671 = vsel %vm670, %v669, 0.0
  %v672 = vrot.slane %v671, 4
  %v673 = vadd.f32 %v671, %v672
  %v674 = vrot.slane %v673, 2
  %v675 = vadd.f32 %v673, %v674
  %v676 = vrot.slane %v675, 1
  %v677 = vadd.f32 %v675, %v676
  %v678 = vmul.f32 %v677, %v654
  %v679 = vsub.f32 %v669, %v678
  %v680 = vmul.f32 %v679, %v679
  %v681 = vsel %vm670, %v680, 0.0
  %v682 = vrot.slane %v681, 4
  %v683 = vadd.f32 %v681, %v682
  %v684 = vrot.slane %v683, 2
  %v685 = vadd.f32 %v683, %v684
  %v686 = vrot.slane %v685, 1
  %v687 = vadd.f32 %v685, %v686
  %v688 = vmul.f32 %v687, %v654
  %v689 = vadd.f32 %v688, 1e-05
  %v690 = vrsqrt.pop %v689
  %v691 = vmul.f32 %v679, %v690
  %v692 = vld [vmem:[%s2 + $0x48] sm:$0xff]
  %v693 = vld [vmem:[%s2 + $0x50] sm:$0xff]
  %v694 = vld [vmem:[%s2 + $0x58] sm:$0xff]
  %v695 = vld [vmem:[%s2 + $0x60] sm:$0xff]
  %v696 = vld [vmem:[%s2 + $0x68] sm:$0xf]
  %vm697 = vcmask 31744
  %v699 = vsel %vm697, %v691, 0
  %vm701 = vcmask 1043456
  %v703 = vsel %vm701, %v696, 0
  %705 = vmatprep.subr.mxu0 0.0
  %706 = vmatpush1.msra.mxu0 %v703
  %707 = vmatprep.subr.mxu0 0.0
  %708 = vmatpush1.msra.mxu0 0.0
  %709 = vmatprep.subr.mxu0 0.0
  %710 = vmatpush1.msra.mxu0 0.0
  %711 = vmatprep.subr.mxu0 0.0
  %712 = vmatpush1.msra.mxu0 0.0
  %713 = vmatprep.subr.mxu0 0.0
  %714 = vmatpush1.msra.mxu0 0.0
  %715 = vmatprep.subr.mxu0 0.0
  %716 = vmatpush1.msra.mxu0 0.0
  %717 = vmatprep.subr.mxu0 0.0
  %718 = vmatpush1.msra.mxu0 0.0
  %719 = vmatprep.subr.mxu0 0.0
  %720 = vmatpush1.msra.mxu0 0.0
  %721 = vmatprep.subr.mxu0 0.0
  %722 = vmatpush1.msra.mxu0 0.0
  %723 = vmatprep.subr.mxu0 0.0
  %724 = vmatpush1.msra.mxu0 0.0
  %725 = vmatprep.subr.mxu0 0.0
  %726 = vmatpush1.msra.mxu0 0.0
  %727 = vmatprep.subr.mxu0 0.0
  %728 = vmatpush1.msra.mxu0 0.0
  %729 = vmatprep.subr.mxu0 0.0
  %730 = vmatpush1.msra.mxu0 0.0
  %731 = vmatprep.subr.mxu0 0.0
  %732 = vmatpush1.msra.mxu0 0.0
  %733 = vmatprep.subr.mxu0 0.0
  %734 = vmatpush1.msra.mxu0 0.0
  %735 = vmatprep.subr.mxu0 0.0
  %736 = vmatpush1.msra.mxu0 0.0
  %737 = vmatprep.subr.mxu0 0.0
  %738 = vmatpush1.msra.mxu0 0.0
  %739 = vmatprep.subr.mxu0 0.0
  %740 = vmatpush1.msra.mxu0 0.0
  %741 = vmatprep.subr.mxu0 0.0
  %742 = vmatpush1.msra.mxu0 0.0
  %743 = vmatprep.subr.mxu0 0.0
  %744 = vmatpush1.msra.mxu0 0.0
  %745 = vmatprep.subr.mxu0 0.0
  %746 = vmatpush1.msra.mxu0 0.0
  %747 = vmatprep.subr.mxu0 0.0
  %748 = vmatpush1.msra.mxu0 0.0
  %749 = vmatprep.subr.mxu0 0.0
  %750 = vmatpush1.msra.mxu0 0.0
  %751 = vmatprep.subr.mxu0 0.0
  %752 = vmatpush1.msra.mxu0 0.0
  %753 = vmatprep.subr.mxu0 0.0
  %754 = vmatpush1.msra.mxu0 0.0
  %755 = vmatprep.subr.mxu0 0.0
  %756 = vmatpush1.msra.mxu0 0.0
  %757 = vmatprep.subr.mxu0 0.0
  %758 = vmatpush1.msra.mxu0 0.0
  %759 = vmatprep.subr.mxu0 0.0
  %760 = vmatpush1.msra.mxu0 0.0
  %761 = vmatprep.subr.mxu0 0.0
  %762 = vmatpush1.msra.mxu0 0.0
  %763 = vmatprep.subr.mxu0 0.0
  %764 = vmatpush1.msra.mxu0 0.0
  %765 = vmatprep.subr.mxu0 0.0
  %766 = vmatpush1.msra.mxu0 0.0
  %767 = vmatprep.subr.mxu0 0.0
  %768 = vmatpush1.msra.mxu0 0.0
  %769 = vmatprep.mubr.f32.mxu0 0.0
  %770 = vmatmul.mubr.f32.gmra.mrb[0].mxu0 %v699
  %v771 = vpop.f32.mrb[0].mxu0
  %v772 = vadd.f32 0.0, %v771
  %v773 = vpop.f32.mrb[0].mxu0
  %774 = vdwg.mxu0
  %v776 = vsel %vm241, %v668, 0
  %778 = vmatprep.subr.mxu0 0.0
  %779 = vmatpush1.msra.mxu0 %v692
  %780 = vmatprep.subr.mxu0 0.0
  %781 = vmatpush1.msra.mxu0 %v693
  %782 = vmatprep.subr.mxu0 0.0
  %783 = vmatpush1.msra.mxu0 %v694
  %784 = vmatprep.subr.mxu0 0.0
  %785 = vmatpush1.msra.mxu0 %v695
  %786 = vmatprep.subr.mxu0 0.0
  %787 = vmatpush1.msra.mxu0 0.0
  %788 = vmatprep.subr.mxu0 0.0
  %789 = vmatpush1.msra.mxu0 0.0
  %790 = vmatprep.subr.mxu0 0.0
  %791 = vmatpush1.msra.mxu0 0.0
  %792 = vmatprep.subr.mxu0 0.0
  %793 = vmatpush1.msra.mxu0 0.0
  %794 = vmatprep.subr.mxu0 0.0
  %795 = vmatpush1.msra.mxu0 0.0
  %796 = vmatprep.subr.mxu0 0.0
  %797 = vmatpush1.msra.mxu0 0.0
  %798 = vmatprep.subr.mxu0 0.0
  %799 = vmatpush1.msra.mxu0 0.0
  %800 = vmatprep.subr.mxu0 0.0
  %801 = vmatpush1.msra.mxu0 0.0
  %802 = vmatprep.subr.mxu0 0.0
  %803 = vmatpush1.msra.mxu0 0.0
  %804 = vmatprep.subr.mxu0 0.0
  %805 = vmatpush1.msra.mxu0 0.0
  %806 = vmatprep.subr.mxu0 0.0
  %807 = vmatpush1.msra.mxu0 0.0
  %808 = vmatprep.subr.mxu0 0.0
  %809 = vmatpush1.msra.mxu0 0.0
  %810 = vmatprep.subr.mxu0 0.0
  %811 = vmatpush1.msra.mxu0 0.0
  %812 = vmatprep.subr.mxu0 0.0
  %813 = vmatpush1.msra.mxu0 0.0
  %814 = vmatprep.subr.mxu0 0.0
  %815 = vmatpush1.msra.mxu0 0.0
  %816 = vmatprep.subr.mxu0 0.0
  %817 = vmatpush1.msra.mxu0 0.0
  %818 = vmatprep.subr.mxu0 0.0
  %819 = vmatpush1.msra.mxu0 0.0
  %820 = vmatprep.subr.mxu0 0.0
  %821 = vmatpush1.msra.mxu0 0.0
  %822 = vmatprep.subr.mxu0 0.0
  %823 = vmatpush1.msra.mxu0 0.0
  %824 = vmatprep.subr.mxu0 0.0
  %825 = vmatpush1.msra.mxu0 0.0
  %826 = vmatprep.subr.mxu0 0.0
  %827 = vmatpush1.msra.mxu0 0.0
  %828 = vmatprep.subr.mxu0 0.0
  %829 = vmatpush1.msra.mxu0 0.0
  %830 = vmatprep.subr.mxu0 0.0
  %831 = vmatpush1.msra.mxu0 0.0
  %832 = vmatprep.subr.mxu0 0.0
  %833 = vmatpush1.msra.mxu0 0.0
  %834 = vmatprep.subr.mxu0 0.0
  %835 = vmatpush1.msra.mxu0 0.0
  %836 = vmatprep.subr.mxu0 0.0
  %837 = vmatpush1.msra.mxu0 0.0
  %838 = vmatprep.subr.mxu0 0.0
  %839 = vmatpush1.msra.mxu0 0.0
  %840 = vmatprep.subr.mxu0 0.0
  %841 = vmatpush1.msra.mxu0 0.0
  %842 = vmatprep.mubr.f32.mxu0 0.0
  %843 = vmatmul.mubr.f32.gmra.mrb[0].mxu0 %v776
  %v844 = vpop.f32.mrb[0].mxu0
  %v845 = vadd.f32 %v772, %v844
  %v846 = vpop.f32.mrb[0].mxu0
  %847 = vdwg.mxu0
  %v848 = vld [vmem:[%s2 + $0x73] sm:$0x1]
  %v849 = vlaneseq
  %v850 = vshrl.u32 %v849, 7
  %v851 = vsub.s32 0, %v850
  %v852 = vrot.slane %v848, %v851
  %v853 = vadd.f32 %v845, %v852
  %v854 = vlaneseq
  %v855 = vand.u32 %v854, 127
  %vm856 = vcmp.lt.s32.totalorder %v855, 32
  %v857 = vsel %vm856, %v853, 0.0
  %vm858 = vcmask 517120
  %v859 = vsel %vm858, %v857, 0.0
  %860 = vadd.xlane.f32.xlu0 %v859
  %v861 = vpop.xlane.xlu0 %860
  %v862 = vmul.f32 %v861, 0.03125
  %v863 = vsel %vm856, 0.0, %v853
  %v864 = vsel %vm858, %v863, 0.0
  %865 = vadd.xlane.f32.xlu0 %v864
  %v866 = vpop.xlane.xlu0 %865
  %v867 = vmul.f32 %v866, 0.03125
  %v868 = vsel %vm856, %v862, %v867
  %v869 = vsub.f32 %v853, %v868
  %v870 = vmul.f32 %v869, %v869
  %v871 = vsel %vm856, %v870, 0.0
  %v872 = vsel %vm858, %v871, 0.0
  %873 = vadd.xlane.f32.xlu0 %v872
  %v874 = vpop.xlane.xlu0 %873
  %v875 = vmul.f32 %v874, 0.03125
  %v876 = vsel %vm856, 0.0, %v870
  %v877 = vsel %vm858, %v876, 0.0
  %878 = vadd.xlane.f32.xlu0 %v877
  %v879 = vpop.xlane.xlu0 %878
  %v880 = vmul.f32 %v879, 0.03125
  %v881 = vadd.f32 %v875, 1e-05
  %v882 = vrsqrt.pop %v881
  %v883 = vadd.f32 %v880, 1e-05
  %v884 = vrsqrt.pop %v883
  %v885 = vsel %vm856, %v882, %v884
  %v886 = vmul.f32 %v869, %v885
  %v887 = vld [vmem:[%s2 + $0x74] sm:$0x1]
  %v888 = vlaneseq
  %v889 = vshrl.u32 %v888, 7
  %v890 = vsub.s32 0, %v889
  %v891 = vrot.slane %v887, %v890
  %v892 = vmul.f32 %v886, %v891
  %v893 = vld [vmem:[%s2 + $0x75] sm:$0x1]
  %v894 = vlaneseq
  %v895 = vshrl.u32 %v894, 7
  %v896 = vsub.s32 0, %v895
  %v897 = vrot.slane %v893, %v896
  %v898 = vadd.f32 %v892, %v897
  %v899 = vtanh.pop %v898
  %v900 = vld [vmem:[%s2 + $0x76] sm:$0x1]
  %v901 = vlaneseq
  %v902 = vshrl.u32 %v901, 7
  %v903 = vsub.s32 0, %v902
  %v904 = vrot.slane %v900, %v903
  %v905 = vmul.f32 %v899, %v904
  %v906 = vsel %vm856, %v905, 0.0
  %v907 = vsel %vm858, %v906, 0.0
  %908 = vadd.xlane.f32.xlu0 %v907
  %v909 = vpop.xlane.xlu0 %908
  %v910 = vld [vmem:[%s2 + $0x77] sm:$0x1]
  %v911 = vlaneseq
  %v912 = vshrl.u32 %v911, 7
  %v913 = vsub.s32 0, %v912
  %v914 = vrot.slane %v910, %v913
  %v915 = vadd.f32 %v909, %v914
  %v916 = vsel %vm856, 0.0, %v905
  %v917 = vsel %vm858, %v916, 0.0
  %918 = vadd.xlane.f32.xlu0 %v917
  %v919 = vpop.xlane.xlu0 %918
  %v920 = vadd.f32 %v919, %v914
  %vm921 = vcmp.eq.s32.totalorder %v855, 0
  %vm922 = vcmp.eq.s32.totalorder %v855, 1
  %924 = vset.pattern.permute.xlu0 1
  %925 = vperm.xlu0 %924, %v920
  %v926 = vpop.permute.xlu0 %925
  %v928 = vsel %vm922, %v926, 0.0
  %930 = vset.pattern.permute.xlu0 0
  %931 = vperm.xlu0 %930, %v915
  %v932 = vpop.permute.xlu0 %931
  %v934 = vsel %vm921, %v932, %v928
  %935 = vst [vmem:[%s3] sm:$0x3] %v934
  // Predicated region
  $region14: #{conv_critic_forward.1} parent=0 // pred_check
    _
  $region15: #{conv_critic_forward.1} parent=0 // pred_check_branch
    %937 = sbr.rel (0) target = $region17
  $region16: #{conv_critic_forward.1} parent=0 // pred_region
    _
  $region17: #{conv_critic_forward.1} parent=0 // pred_fallthru
    _
  // Predicated region
  $region18: #{conv_critic_forward.1} parent=0 // pred_check
    _
  $region19: #{conv_critic_forward.1} parent=0 // pred_check_branch
    %939 = sbr.rel (0) target = $region21
  $region20: #{conv_critic_forward.1} parent=0 // pred_region
    _
  $region21: #{conv_critic_forward.1} parent=0 // pred_fallthru
    _

</llo_original>
